<compile_context>
chip_gen: v7x
topology: tpu7x:2x2x1
jax: 0.10.0
libtpu: 0.0.40
codegen_flags: <defaults>
</compile_context>

<pallas_src>
import jax
import jax.numpy as jnp
from jax.experimental import pallas as pl
from jax.experimental.pallas import tpu as pltpu

ACTIVATION_BIT = 16  # QuantAct default


# ---------------------------------------------------------------------------
# Kernels
# ---------------------------------------------------------------------------
def _quant_act_kernel(x_ref, o_ref):
    """Single-pass per-column asymmetric fake quantization on an (S, TILE_D)
    tile. Each hidden column is quantized with its own min/max over the
    sequence axis, so tiling over D is embarrassingly parallel."""
    n_levels = 2.0 ** ACTIVATION_BIT - 1.0
    n = 2.0 ** (ACTIVATION_BIT - 1)

    # Reduce on the native dtype (min/max commute with the bf16->f32 cast),
    # only the (1, TILE_D) rows are cast to f32.
    x_min = jnp.min(x_ref[...], axis=0, keepdims=True).astype(jnp.float32)
    x_max = jnp.max(x_ref[...], axis=0, keepdims=True).astype(jnp.float32)

    rng = jnp.maximum(x_max - x_min, 1e-8)           # (1, TILE_D)
    scale = n_levels / rng                           # per-column divide only
    inv_scale = rng * (1.0 / n_levels)               # per-element mul, no slab divide
    zp = jnp.round(scale * x_min) + n                # integral zero-point
    lo = zp - n                                      # per-column clip bounds
    hi = zp + (n - 1.0)

    # clip(round(scale*x) , zp-n, zp+n-1) * inv_scale  ==
    #   (clip(round(scale*x - zp), -n, n-1) + zp) / scale   (zp integral)
    y = jnp.clip(jnp.round(scale * x_ref[...].astype(jnp.float32)), lo, hi) * inv_scale
    o_ref[...] = y.astype(o_ref.dtype)


def _minmax_kernel(x_ref, min_ref, max_ref):
    """Pass 1 (two-pass path): per-column min/max accumulated across the S
    grid axis. min_ref/max_ref map to the same (1, TILE_D) block for all S
    steps -> resident accumulators."""
    si = pl.program_id(1)
    bmin = jnp.min(x_ref[...], axis=0, keepdims=True).astype(jnp.float32)
    bmax = jnp.max(x_ref[...], axis=0, keepdims=True).astype(jnp.float32)

    @pl.when(si == 0)
    def _():
        min_ref[...] = bmin
        max_ref[...] = bmax

    @pl.when(si != 0)
    def _():
        min_ref[...] = jnp.minimum(min_ref[...], bmin)
        max_ref[...] = jnp.maximum(max_ref[...], bmax)


def _quantize_kernel(xmin_ref, xmax_ref, x_ref, o_ref):
    """Pass 2 (two-pass path): elementwise fake quantization of an
    (TILE_S, TILE_D) tile using precomputed per-column min/max."""
    n_levels = 2.0 ** ACTIVATION_BIT - 1.0
    n = 2.0 ** (ACTIVATION_BIT - 1)

    x_min = xmin_ref[...]
    x_max = xmax_ref[...]
    rng = jnp.maximum(x_max - x_min, 1e-8)
    scale = n_levels / rng
    inv_scale = rng * (1.0 / n_levels)
    zp = jnp.round(scale * x_min) + n
    lo = zp - n
    hi = zp + (n - 1.0)

    y = jnp.clip(jnp.round(scale * x_ref[...].astype(jnp.float32)), lo, hi) * inv_scale
    o_ref[...] = y.astype(o_ref.dtype)


# ---------------------------------------------------------------------------
# Tiling / VMEM heuristics
# ---------------------------------------------------------------------------
def _physical_vmem_bytes():
    try:
        return int(pltpu.get_tpu_info().vmem_capacity_bytes)
    except Exception:
        return 64 << 20  # v7x floor; conservative (and safe) on v5e/v6e too


def _choose_tile_d(rows, D, itemsize, block_budget):
    """Pick a lane tile: multiple-of-128 divisor of D whose (rows, tile_d)
    block fits the budget. Preference order: >= 8 grid steps (prefetch/
    writeback overlap + both v7x TensorCores busy), block >= 512 KiB
    (amortize ~0.35us/step), even grid count, then widest tile."""
    if D % 128 != 0 or D <= 128:
        return D
    cands = [t for t in range(128, D + 1, 128)
             if D % t == 0 and rows * t * itemsize <= block_budget]
    if not cands:
        return 128

    def score(t):
        g = D // t
        return (g >= 8, rows * t * itemsize >= (512 << 10), g % 2 == 0, t)

    return max(cands, key=score)


def _largest_div_mult8(S, cap):
    """Largest multiple-of-8 divisor of S that is < S and <= cap."""
    best = None
    t = 8
    while t < S and t <= cap:
        if S % t == 0:
            best = t
        t += 8
    return best


def _vmem_limit(rows, td, itemsize, vmem_cap):
    blk = rows * td
    # double-buffered in + out blocks, ~3 f32-slab working set, 1 MiB margin
    est = 4 * blk * itemsize + 3 * blk * 4 + (1 << 20)
    return int(min(max(int(est * 1.25), 32 << 20), (vmem_cap * 3) // 4))


# ---------------------------------------------------------------------------
# Wrapper
# ---------------------------------------------------------------------------
def quant_act_forward(x, *, tile_d=None, tile_s=None, max_block_bytes=None):
    """x: (1, S, D) float32 or bfloat16. Returns fake-quantized activations,
    same shape and dtype. Per-channel range is computed over the sequence
    axis (dim=1), matching the llama-layer dynamic-range branch of
    QuantAct.forward()."""
    assert x.ndim == 3 and x.shape[0] == 1, "llama-layer dynamic-range path: batch == 1"
    _, S, D = x.shape
    x2d = x[0]  # (S, D)
    itemsize = jnp.dtype(x.dtype).itemsize

    vmem_cap = _physical_vmem_bytes()
    if max_block_bytes is None:
        # ~1/16 of physical VMEM per block (4 MiB on v7x, 8 MiB on v5e/v6e)
        max_block_bytes = int(min(max(vmem_cap // 16, 1 << 20), 8 << 20))

    force_two_pass = tile_s is not None and tile_s < S
    td0 = tile_d if tile_d is not None else _choose_tile_d(S, D, itemsize, max_block_bytes)
    if D % td0 != 0:
        td0 = D

    def _single_pass(td):
        grid = (D // td,)
        return pl.pallas_call(
            _quant_act_kernel,
            out_shape=jax.ShapeDtypeStruct((S, D), x.dtype),
            grid=grid,
            in_specs=[pl.BlockSpec((S, td), lambda j: (0, j))],
            out_specs=pl.BlockSpec((S, td), lambda j: (0, j)),
            compiler_params=pltpu.CompilerParams(
                dimension_semantics=("parallel",),
                vmem_limit_bytes=_vmem_limit(S, td, itemsize, vmem_cap),
            ),
        )(x2d)

    def _two_pass(ts, td):
        n_d, n_s = D // td, S // ts
        vlim = _vmem_limit(ts, td, itemsize, vmem_cap)
        # Pass 1: per-column min/max, accumulated across the S axis.
        x_min, x_max = pl.pallas_call(
            _minmax_kernel,
            out_shape=(jax.ShapeDtypeStruct((1, D), jnp.float32),
                       jax.ShapeDtypeStruct((1, D), jnp.float32)),
            grid=(n_d, n_s),
            in_specs=[pl.BlockSpec((ts, td), lambda dj, si: (si, dj))],
            out_specs=(pl.BlockSpec((1, td), lambda dj, si: (0, dj)),
                       pl.BlockSpec((1, td), lambda dj, si: (0, dj))),
            compiler_params=pltpu.CompilerParams(
                dimension_semantics=("parallel", "arbitrary"),
                vmem_limit_bytes=vlim,
            ),
        )(x2d)
        # Pass 2: streaming elementwise fake quantization.
        return pl.pallas_call(
            _quantize_kernel,
            out_shape=jax.ShapeDtypeStruct((S, D), x.dtype),
            grid=(n_d, n_s),
            in_specs=[pl.BlockSpec((1, td), lambda dj, si: (0, dj)),
                      pl.BlockSpec((1, td), lambda dj, si: (0, dj)),
                      pl.BlockSpec((ts, td), lambda dj, si: (si, dj))],
            out_specs=pl.BlockSpec((ts, td), lambda dj, si: (si, dj)),
            compiler_params=pltpu.CompilerParams(
                dimension_semantics=("parallel", "parallel"),
                vmem_limit_bytes=vlim,
            ),
        )(x_min, x_max, x2d)

    single_ok = (S * td0 * itemsize <= max_block_bytes) and not force_two_pass
    if single_ok or D % 128 != 0:
        out2d = _single_pass(td0)
    else:
        if tile_s is not None:
            ts = tile_s
        else:
            row_cap = max(8, max_block_bytes // (max(512, 128) * itemsize))
            ts = _largest_div_mult8(S, row_cap)
        if ts is None or ts <= 0 or S % ts != 0 or ts % 8 != 0 or ts >= S:
            # TODO(synk): ragged-S masking for sequences with no clean
            # multiple-of-8 tiling; fall back to single pass.
            out2d = _single_pass(td0)
        else:
            td = tile_d if tile_d is not None else _choose_tile_d(ts, D, itemsize, max_block_bytes)
            if D % td != 0:
                td = D
            out2d = _two_pass(ts, td)

    return out2d[None, :, :]


def quant_act_reference(x):
    """Pure-JAX reference mirroring the PyTorch forward (dynamic-range branch)."""
    xc = x[0].astype(jnp.float32)  # (S, D)
    x_min = jnp.min(xc, axis=0)
    x_max = jnp.max(xc, axis=0)
    n_levels = 2.0 ** ACTIVATION_BIT - 1.0
    scale = n_levels / jnp.maximum(x_max - x_min, 1e-8)
    zp = jnp.round(scale * x_min) + 2.0 ** (ACTIVATION_BIT - 1)
    q = jnp.round(scale * xc - zp)
    n = 2.0 ** (ACTIVATION_BIT - 1)
    q = 0.5 * (jnp.abs(-q - n) - jnp.abs(q - (n - 1.0)) - 1.0)
    return ((q + zp) / scale)[None]


# TODO(synk): calibration/search paths (running range state, entropy/DED-driven
# range search, global cross-layer state) are host-side stateful control flow
# and are not implemented as kernels.

if __name__ == "__main__":
    key = jax.random.PRNGKey(0)
    B, S, D = 1, 8, 256  # small shapes; D != 4096 selects the dynamic-range branch
    x = jax.random.normal(key, (B, S, D), dtype=jnp.float32) * 3.0

    # Single-pass path, f32 boundary.
    out = jax.block_until_ready(quant_act_forward(x))
    ref = quant_act_reference(x)
    assert out.shape == x.shape and out.dtype == x.dtype
    assert jnp.allclose(out, ref, atol=1e-3, rtol=1e-3)

    # bf16 HBM-boundary path (halves HBM traffic; compute stays f32 in-kernel).
    x_bf16 = x.astype(jnp.bfloat16)
    out_bf16 = jax.block_until_ready(quant_act_forward(x_bf16))
    assert out_bf16.shape == x.shape and out_bf16.dtype == jnp.bfloat16
    assert jnp.allclose(out_bf16.astype(jnp.float32),
                        quant_act_reference(x_bf16), atol=5e-2, rtol=5e-2)

    # Two-pass (S-blocked) path, forced at small shapes to exercise it.
    S2, D2 = 64, 512
    x2 = jax.random.normal(jax.random.PRNGKey(0), (1, S2, D2), dtype=jnp.float32) * 3.0
    out2 = jax.block_until_ready(quant_act_forward(x2, tile_d=128, tile_s=16))
    ref2 = quant_act_reference(x2)
    assert out2.shape == x2.shape
    assert jnp.allclose(out2, ref2, atol=1e-3, rtol=1e-3)

    print("KERNEL_OK")
</pallas_src>

<mosaic_0001>
module attributes {stable_mosaic.version = 11 : i64} {
  func.func @_quant_act_kernel(%arg0: i32, %arg1: memref<8x128xf32, #tpu.memory_space<vmem>>, %arg2: memref<8x128xf32, #tpu.memory_space<vmem>>) attributes {dimension_semantics = [#tpu.dimension_semantics<parallel>], iteration_bounds = array<i64: 2>, scalar_prefetch = 0 : i64, scratch_operands = 0 : i64, tpu.core_type = #tpu.core_type<tc>, window_params = [{transform_indices = @transform_0, window_bounds = array<i64: 8, 128>}, {transform_indices = @transform_1, window_bounds = array<i64: 8, 128>}]} {
    %c0 = arith.constant 0 : index
    %c0_0 = arith.constant 0 : index
    %0 = vector.load %arg1[%c0, %c0_0] : memref<8x128xf32, #tpu.memory_space<vmem>>, vector<8x128xf32>
    %cst = arith.constant dense<0x7F800000> : vector<128xf32>
    %1 = vector.multi_reduction <minimumf>, %0, %cst [0] : vector<8x128xf32> to vector<128xf32>
    %2 = vector.shape_cast %1 : vector<128xf32> to vector<1x128xf32>
    %c0_1 = arith.constant 0 : index
    %c0_2 = arith.constant 0 : index
    %3 = vector.load %arg1[%c0_1, %c0_2] : memref<8x128xf32, #tpu.memory_space<vmem>>, vector<8x128xf32>
    %cst_3 = arith.constant dense<0xFF800000> : vector<128xf32>
    %4 = vector.multi_reduction <maximumf>, %3, %cst_3 [0] : vector<8x128xf32> to vector<128xf32>
    %5 = vector.shape_cast %4 : vector<128xf32> to vector<1x128xf32>
    %6 = arith.subf %5, %2 : vector<1x128xf32>
    %cst_4 = arith.constant 9.99999993E-9 : f32
    %7 = vector.broadcast %cst_4 : f32 to vector<1x128xf32>
    %8 = arith.maximumf %6, %7 : vector<1x128xf32>
    %cst_5 = arith.constant 6.553500e+04 : f32
    %9 = vector.broadcast %cst_5 : f32 to vector<1x128xf32>
    %10 = arith.divf %9, %8 : vector<1x128xf32>
    %cst_6 = arith.constant 1.52590219E-5 : f32
    %11 = vector.broadcast %cst_6 : f32 to vector<1x128xf32>
    %12 = arith.mulf %8, %11 : vector<1x128xf32>
    %13 = arith.mulf %10, %2 : vector<1x128xf32>
    %14 = math.roundeven %13 : vector<1x128xf32>
    %cst_7 = arith.constant 3.276800e+04 : f32
    %15 = vector.broadcast %cst_7 : f32 to vector<1x128xf32>
    %16 = arith.addf %14, %15 : vector<1x128xf32>
    %cst_8 = arith.constant 3.276800e+04 : f32
    %17 = vector.broadcast %cst_8 : f32 to vector<1x128xf32>
    %18 = arith.subf %16, %17 : vector<1x128xf32>
    %cst_9 = arith.constant 3.276700e+04 : f32
    %19 = vector.broadcast %cst_9 : f32 to vector<1x128xf32>
    %20 = arith.addf %16, %19 : vector<1x128xf32>
    %c0_10 = arith.constant 0 : index
    %c0_11 = arith.constant 0 : index
    %21 = vector.load %arg1[%c0_10, %c0_11] : memref<8x128xf32, #tpu.memory_space<vmem>>, vector<8x128xf32>
    %22 = vector.broadcast %10 : vector<1x128xf32> to vector<8x128xf32>
    %23 = arith.mulf %22, %21 : vector<8x128xf32>
    %24 = math.roundeven %23 : vector<8x128xf32>
    %25 = vector.broadcast %18 : vector<1x128xf32> to vector<8x128xf32>
    %26 = arith.maximumf %25, %24 : vector<8x128xf32>
    %27 = vector.broadcast %20 : vector<1x128xf32> to vector<8x128xf32>
    %28 = arith.minimumf %27, %26 : vector<8x128xf32>
    %29 = vector.broadcast %12 : vector<1x128xf32> to vector<8x128xf32>
    %30 = arith.mulf %28, %29 : vector<8x128xf32>
    %c0_12 = arith.constant 0 : index
    %c0_13 = arith.constant 0 : index
    %31 = vector.load %arg2[%c0_12, %c0_13] : memref<8x128xf32, #tpu.memory_space<vmem>>, vector<8x128xf32>
    tpu.vector_store %arg2[%c0_12, %c0_13], %30 {strides = array<i32>} : memref<8x128xf32, #tpu.memory_space<vmem>>, vector<8x128xf32>,
    return
  }
  func.func @transform_0(%arg0: i32) -> (i32, i32) {
    %c0_i32 = arith.constant 0 : i32
    %c0_i32_0 = arith.constant 0 : i32
    return %c0_i32, %arg0 : i32, i32
  }
  func.func @transform_1(%arg0: i32) -> (i32, i32) {
    %c0_i32 = arith.constant 0 : i32
    %c0_i32_0 = arith.constant 0 : i32
    return %c0_i32, %arg0 : i32, i32
  }
}

</mosaic_0001>

<llo_original>
// kernel: tpu_custom_call.1
$region0: #{tpu_custom_call.1}
  #allocation0 [shape = 'u32[]', space=smem, size = 0x4, offset = 0x4, fixed_abs, tag = 'smem constant byte address 0x4 - core index']
  #allocation1 [shape = 'u32[144,128]{1,0:T(1,128)}', space=vmem, size = 0x12000, scoped, tag = 'internal scratch']
  %s0 = inlined_call_operand.hbm [shape: f32[8,256], index: 0, kind: input, shape index: {}]
  %s1 = inlined_call_operand.hbm [shape: f32[8,256], index: 1, kind: output, shape index: {}]
  %s2 = sld [smem:[#allocation0]]
  $region41: #{tpu_custom_call.1} parent=0
    _
  %s4 = ssub.s32 1, %s2
  %s5 = scalar_select 0, %s4, %s2
  $region1: #{tpu_custom_call.1} parent=0
    #allocation2 [shape = 'u8[8192]{0}', space=vmem, size = 0x2000, scoped, tag = 'input window, operand 0']
    #allocation3 [shape = 's32[2]{0}', space=sflag, size = 0x8, scoped, tag = 'scoped memory for tpu_custom_call.1']
    #allocation4 [shape = 's32[2]{0}', space=sflag, size = 0x8, scoped, tag = 'scoped memory for tpu_custom_call.1']
    #allocation5 [shape = 'u8[8192]{0}', space=vmem, size = 0x2000, scoped, tag = 'output window, operand 0']
    %6 = vsyncpa [#allocation3], 0
    %s7 = scalar_lea.sflag [#allocation3], 1
    %8 = vsyncpa %s7, 0
    %9 = vsyncpa [#allocation4], 0
    %s10 = scalar_lea.sflag [#allocation4], 1
    %11 = vsyncpa %s10, 0
    loop: start=0, step=1, limit=4
    $region2: #{tpu_custom_call.1} parent=1 // loop_pre_header
      _
    $region3: #{tpu_custom_call.1} parent=1 // loop_header
      %s13 = sphi 0, %s17
      %p14 = scmp.ge.s32.totalorder %s13, 4
      %s23 = sphi 0, %s25
      %s26 = sphi 0, %s23
      %s27 = sphi 0, %s26
      %s43 = sphi 0, %s27
      %s49 = sphi 0, %s51
      %s52 = sphi 0, %s49
      %s53 = sphi 0, %s52
      %s69 = sphi 0, %s53
    $region4: #{tpu_custom_call.1} parent=1 // loop_header_branch
      %16 = sbr.rel (%p14) target = $region8
    $region5: #{tpu_custom_call.1} parent=1 // loop_body
      %s18 = ssub.s32 %s13, 1
      %s19 = ssub.s32 %s13, 2
      %s20 = sadd.s32 %s13, 1
      %s21 = ssub.s32 %s13, %s20
      %p22 = scmp.eq.s32.totalorder %s21, 0
      %s24 = sadd.s32 %s23, 1
      %s25 = scalar_select %p22, %s23, %s24
      %p28 = pneg %p22
      %p29 = scmp.eq.s32.totalorder %s13, 1
      %p30 = por %p28, %p29
      %p31 = scmp.ne.s32.totalorder %s23, %s26
      %p32 = scmp.eq.s32.totalorder %s13, 0
      %p33 = por %p31, %p32
      %p34 = scmp.ne.s32.totalorder %s23, %s26
      %p35 = scmp.eq.s32.totalorder %s18, 1
      %p36 = por %p34, %p35
      %p37 = scmp.ne.s32.totalorder %s26, %s27
      %p38 = scmp.eq.s32.totalorder %s18, 0
      %p39 = por %p37, %p38
      %p40 = scmp.ne.s32.totalorder %s26, %s27
      %p41 = scmp.eq.s32.totalorder %s19, 1
      %p42 = por %p40, %p41
      %p44 = scmp.ne.s32.totalorder %s27, %s43
      %p45 = scmp.eq.s32.totalorder %s19, 0
      %p46 = por %p44, %p45
      %s47 = ssub.s32 %s13, %s20
      %p48 = scmp.eq.s32.totalorder %s47, 0
      %s50 = sadd.s32 %s49, 1
      %s51 = scalar_select %p48, %s49, %s50
      %p54 = pneg %p48
      %p55 = scmp.eq.s32.totalorder %s13, 1
      %p56 = por %p54, %p55
      %p57 = scmp.ne.s32.totalorder %s49, %s52
      %p58 = scmp.eq.s32.totalorder %s13, 0
      %p59 = por %p57, %p58
      %p60 = scmp.ne.s32.totalorder %s49, %s52
      %p61 = scmp.eq.s32.totalorder %s18, 1
      %p62 = por %p60, %p61
      %p63 = scmp.ne.s32.totalorder %s52, %s53
      %p64 = scmp.eq.s32.totalorder %s18, 0
      %p65 = por %p63, %p64
      %p66 = scmp.ne.s32.totalorder %s52, %s53
      %p67 = scmp.eq.s32.totalorder %s19, 1
      %p68 = por %p66, %p67
      %p70 = scmp.ne.s32.totalorder %s53, %s69
      %p71 = scmp.eq.s32.totalorder %s19, 0
      %p72 = por %p70, %p71
      %p73 = scmp.le.s32.totalorder 1, %s13
      %p74 = scmp.lt.s32.totalorder %s13, 3
      %p75 = pnand %p73, %p74
      %p76 = pneg %p75
      // Predicated region
      $region9: #{tpu_custom_call.1} parent=5 // pred_check
        _
      $region10: #{tpu_custom_call.1} parent=5 // pred_check_branch
        %78 = sbr.rel (%p75) target = $region12
      $region11: #{tpu_custom_call.1} parent=5 // pred_region
        %s79 = ssub.s32 %s13, 1
      $region12: #{tpu_custom_call.1} parent=5 // pred_fallthru
        _
      %p80 = scmp.lt.s32.totalorder %s13, 2
      // Predicated region
      $region13: #{tpu_custom_call.1} parent=5 // pred_check
        %p81 = pneg %p80
      $region14: #{tpu_custom_call.1} parent=5 // pred_check_branch
        %83 = sbr.rel (%p81) target = $region16
      $region15: #{tpu_custom_call.1} parent=5 // pred_region
        // Predicated region
        $region17: #{tpu_custom_call.1} parent=15 // pred_check
          %p84 = pneg %p33
        $region18: #{tpu_custom_call.1} parent=15 // pred_check_branch
          %86 = sbr.rel (%p84) target = $region20
        $region19: #{tpu_custom_call.1} parent=15 // pred_region
          %s87 = sand.u32 %s23, 1
          %s88 = scalar_lea.sflag [#allocation3], %s87
          %s89 = sand.u32 %s23, 1
          %s90 = smul.addr %s89, 8
          %s91 = scalar_lea.vmem [#allocation2], %s90
          %s93 = ssub.s32 128, 128
          %94 = vsyncadd %s88, %s93
          %s95 = smul.addr %s13, 128
          %s96 = scalar_lea.hbm %s0, %s95
          %s98 = sshll.u32 %s91, 4
          %s99 = int_to_ptr.vmem [resolvable:$true] %s98
          %101 = dma.hbm_to_vmem [thread:$0]  %s96, 128, %s99, %s88
        $region20: #{tpu_custom_call.1} parent=15 // pred_fallthru
          _
      $region16: #{tpu_custom_call.1} parent=5 // pred_fallthru
        _
      %p102 = scmp.le.s32.totalorder 1, %s13
      %p103 = scmp.lt.s32.totalorder %s13, 3
      %p104 = pnand %p102, %p103
      %p105 = pneg %p104
      // Predicated region
      $region21: #{tpu_custom_call.1} parent=5 // pred_check
        _
      $region22: #{tpu_custom_call.1} parent=5 // pred_check_branch
        %107 = sbr.rel (%p104) target = $region24
      $region23: #{tpu_custom_call.1} parent=5 // pred_region
        %s108 = ssub.s32 %s13, 1
        %s109 = sand.u32 %s26, 1
        %s110 = scalar_lea.sflag [#allocation3], %s109
        %s111 = sand.u32 %s26, 1
        %s112 = smul.addr %s111, 8
        %s113 = scalar_lea.vmem [#allocation2], %s112
        // Predicated region
        $region25: #{tpu_custom_call.1} parent=23 // pred_check
          %p114 = pneg %p39
        $region26: #{tpu_custom_call.1} parent=23 // pred_check_branch
          %116 = sbr.rel (%p114) target = $region28
        $region27: #{tpu_custom_call.1} parent=23 // pred_region
          %117 = dma.done %s110, 128
        $region28: #{tpu_custom_call.1} parent=23 // pred_fallthru
          _
        %s118 = sand.u32 %s26, 1
        %s119 = scalar_lea.sflag [#allocation3], %s118
        %s120 = sand.u32 %s26, 1
        %s121 = smul.addr %s120, 8
        %s122 = scalar_lea.vmem [#allocation2], %s121
        %p123 = pneg %p39
        %p124 = pneg %p36
        %p125 = pneg %p65
        %p126 = pneg %p62
        %s127 = sand.u32 %s52, 1
        %s128 = scalar_lea.sflag [#allocation4], %s127
        %s129 = sand.u32 %s52, 1
        %s130 = smul.addr %s129, 8
        %s131 = scalar_lea.vmem [#allocation5], %s130
        %v132 = vld [vmem:[%s113] sm:$0xff]
        %v133 = vrot.slane %v132, 4
        %v134 = vmin.f32 %v132, %v133
        %v135 = vrot.slane %v134, 2
        %v136 = vmin.f32 %v134, %v135
        %v137 = vrot.slane %v136, 1
        %v138 = vmin.f32 %v136, %v137
        %v139 = vrot.slane %v132, 4
        %v140 = vmax.f32 %v132, %v139
        %v141 = vrot.slane %v140, 2
        %v142 = vmax.f32 %v140, %v141
        %v143 = vrot.slane %v142, 1
        %v144 = vmax.f32 %v142, %v143
        %v145 = vsub.f32 %v144, %v138
        %v146 = vmax.f32 %v145, 1e-08
        %v147 = vrcp.pop %v146
        %v148 = vmul.f32 65535.0, %v147
        %v149 = vmul.f32 %v146, 1.5259022e-05
        %v150 = vmul.f32 %v148, %v138
        %v151 = vround.ne.pseudo %v150
        %v152 = vadd.f32 %v151, 32768.0
        %v153 = vsub.f32 %v152, 32768.0
        %v154 = vadd.f32 %v152, 32767.0
        %v155 = vmul.f32 %v148, %v132
        %v156 = vround.ne.pseudo %v155
        %v157 = vmax.f32 %v153, %v156
        %v158 = vmin.f32 %v154, %v157
        %v159 = vmul.f32 %v158, %v149
        %160 = vst [vmem:[%s131] sm:$0xff] %v159
        %s161 = sand.u32 %s52, 1
        %s162 = scalar_lea.sflag [#allocation4], %s161
        %s163 = sand.u32 %s52, 1
        %s164 = smul.addr %s163, 8
        %s165 = scalar_lea.vmem [#allocation5], %s164
        // Predicated region
        $region29: #{tpu_custom_call.1} parent=23 // pred_check
          %p166 = pneg %p62
        $region30: #{tpu_custom_call.1} parent=23 // pred_check_branch
          %168 = sbr.rel (%p166) target = $region32
        $region31: #{tpu_custom_call.1} parent=23 // pred_region
          %s170 = ssub.s32 128, 128
          %171 = vsyncadd %s162, %s170
          %s172 = smul.addr %s18, 128
          %s173 = scalar_lea.hbm %s1, %s172
          %s175 = sshll.u32 %s165, 4
          %s176 = int_to_ptr.vmem [resolvable:$true] %s175
          %178 = dma.vmem_to_hbm [thread:$0]  %s176, 128, %s173, %s162
        $region32: #{tpu_custom_call.1} parent=23 // pred_fallthru
          _
      $region24: #{tpu_custom_call.1} parent=5 // pred_fallthru
        _
      %p179 = scmp.le.s32.totalorder 2, %s13
      // Predicated region
      $region33: #{tpu_custom_call.1} parent=5 // pred_check
        %p180 = pneg %p179
      $region34: #{tpu_custom_call.1} parent=5 // pred_check_branch
        %182 = sbr.rel (%p180) target = $region36
      $region35: #{tpu_custom_call.1} parent=5 // pred_region
        %s183 = ssub.s32 %s13, 2
        // Predicated region
        $region37: #{tpu_custom_call.1} parent=35 // pred_check
          %p184 = pneg %p68
        $region38: #{tpu_custom_call.1} parent=35 // pred_check_branch
          %186 = sbr.rel (%p184) target = $region40
        $region39: #{tpu_custom_call.1} parent=35 // pred_region
          %s187 = sand.u32 %s53, 1
          %s188 = scalar_lea.sflag [#allocation4], %s187
          %s189 = sand.u32 %s53, 1
          %s190 = smul.addr %s189, 8
          %s191 = scalar_lea.vmem [#allocation5], %s190
          %192 = dma.done %s188, 128
        $region40: #{tpu_custom_call.1} parent=35 // pred_fallthru
          _
      $region36: #{tpu_custom_call.1} parent=5 // pred_fallthru
        _
    $region6: #{tpu_custom_call.1} parent=1 // loop_footer
      %s17 = sadd.s32 1, %s13
    $region7: #{tpu_custom_call.1} parent=1 // loop_footer_branch
      %12 = sbr.rel target = $region3
    $region8: #{tpu_custom_call.1} parent=1 // loop_exit
      _
    %193 = vsyncpa [#allocation3], 1
    %s194 = scalar_lea.sflag [#allocation3], 1
    %195 = vsyncpa %s194, 1
    %196 = vsyncpa [#allocation4], 1
    %s197 = scalar_lea.sflag [#allocation4], 1
    %198 = vsyncpa %s197, 1

</llo_original>
